<compile_context>
chip_gen: v6e
topology: v6e:2x2x1
jax: 0.10.0
libtpu: 0.0.40
codegen_flags: <defaults>
</compile_context>

<pallas_src>
import functools

import jax
import jax.numpy as jnp
from jax import lax
from jax.experimental import pallas as pl
from jax.experimental.pallas import tpu as pltpu

LANES = 128
SUBLANES = 8


def _loss_kernel(ac_ref, ap_ref, an_ref, tc_ref, tp_ref, tn_ref,
                 out_ref, acc_ref, *,
                 block_rows, blocks_per_shard, num_blocks, rows,
                 reduce_to_acc, has_tail, needs_range_check):
    c = pl.program_id(0)   # shard ("parallel": one per TensorCore on dual-TC chips)
    i = pl.program_id(1)   # streaming step within shard ("arbitrary")
    logical_block = c * blocks_per_shard + i

    @pl.when(i == 0)
    def _():
        acc_ref[...] = jnp.zeros_like(acc_ref)

    def accumulate(mask_tail):
        a_c = ac_ref[...].astype(jnp.float32)
        a_p = ap_ref[...].astype(jnp.float32)
        a_n = an_ref[...].astype(jnp.float32)
        t_c = tc_ref[...].astype(jnp.float32)
        t_p = tp_ref[...].astype(jnp.float32)
        t_n = tn_ref[...].astype(jnp.float32)

        # Factored arithmetic: per-frame errors, then adjacent differences.
        e_c = a_c - t_c
        e_n = a_n - t_n
        e_p = a_p - t_p
        d_next = e_c - e_n
        d_prev = e_c - e_p
        sq = d_next * d_next + d_prev * d_prev + e_c * e_c

        if mask_tail:
            row_id = (logical_block * block_rows
                      + lax.broadcasted_iota(jnp.int32, sq.shape, 0))
            sq = jnp.where(row_id < rows, sq, 0.0)

        if reduce_to_acc:
            # Tile-local partial sum to one (8, 128) strip: pure VPU vreg adds
            # (the trailing (8, 128) tile is preserved by the reshape).
            acc_ref[...] += sq.reshape(-1, SUBLANES, LANES).sum(axis=0)
        else:
            acc_ref[...] += sq

    if has_tail:
        in_range = logical_block < num_blocks
        is_tail = logical_block == num_blocks - 1

        @pl.when(jnp.logical_and(in_range, jnp.logical_not(is_tail)))
        def _():
            accumulate(False)

        @pl.when(is_tail)
        def _():
            accumulate(True)
    elif needs_range_check:
        @pl.when(logical_block < num_blocks)
        def _():
            accumulate(False)
    else:
        accumulate(False)

    @pl.when(i == blocks_per_shard - 1)
    def _():
        out_ref[0] = acc_ref[...]


def _chip_defaults():
    """(block_rows, shards) per TPU generation; conservative if unknown."""
    kind = ""
    try:
        kind = (jax.devices()[0].device_kind or "").lower()
    except Exception:
        pass
    if "7" in kind:            # v7x: 2 TensorCores/chip, 64 MiB VMEM per TC
        return 4096, 2
    if "v6" in kind:           # v6e
        return 4096, 1
    if "v5" in kind:           # v5e / v5p (v5e scoped-VMEM default is 16 MiB)
        return 2048, 1
    return 1024, 1


def adjacent_frame_loss_mse(a_curr, a_prev, a_next, t_curr, t_prev, t_next,
                            *, block_rows=None):
    assert a_curr.shape == a_prev.shape == a_next.shape
    assert a_curr.shape == t_curr.shape == t_prev.shape == t_next.shape

    n_elem = a_curr.size
    flats = [x.reshape(-1) for x in
             (a_curr, a_prev, a_next, t_curr, t_prev, t_next)]

    rem = n_elem % LANES
    n_aligned = n_elem - rem
    rows = n_aligned // LANES

    # Misaligned tail (< 128 elements): tiny jnp computation in the wrapper,
    # avoiding a full-tensor pad copy before the kernel.
    tail_sum = jnp.float32(0.0)
    if rem:
        ac_, ap_, an_ = (f[n_aligned:].astype(jnp.float32) for f in flats[:3])
        tc_, tp_, tn_ = (f[n_aligned:].astype(jnp.float32) for f in flats[3:])
        e_c = ac_ - tc_
        d_next = e_c - (an_ - tn_)
        d_prev = e_c - (ap_ - tp_)
        tail_sum = jnp.sum(d_next * d_next + d_prev * d_prev + e_c * e_c)

    if rows == 0:
        return tail_sum / jnp.float32(n_elem)

    args = [f[:n_aligned].reshape(rows, LANES) for f in flats]
    itemsize = jnp.dtype(args[0].dtype).itemsize

    default_rows, num_shards = _chip_defaults()
    if block_rows is None:
        block_rows = default_rows

    # Sublane-tile multiple depends on dtype (8 f32 / 16 bf16 / 32 int8),
    # unless the block covers the full row extent.
    sub_mult = SUBLANES * max(1, 4 // itemsize)
    if block_rows >= rows:
        block_rows = rows
    else:
        block_rows = max(sub_mult, (block_rows // sub_mult) * sub_mult)

    num_blocks = pl.cdiv(rows, block_rows)
    num_shards = max(1, min(num_shards, num_blocks))
    blocks_per_shard = pl.cdiv(num_blocks, num_shards)

    has_tail = (rows % block_rows) != 0
    needs_range_check = (num_shards * blocks_per_shard) > num_blocks
    reduce_to_acc = (block_rows % SUBLANES) == 0
    acc_rows = SUBLANES if reduce_to_acc else block_rows

    if needs_range_check:
        # Clamp so the DMA never walks past the array; out-of-range logical
        # blocks skip their compute entirely inside the kernel.
        def in_map(c, i):
            return (jnp.minimum(c * blocks_per_shard + i, num_blocks - 1), 0)
    else:
        def in_map(c, i):
            return (c * blocks_per_shard + i, 0)

    in_spec = pl.BlockSpec((block_rows, LANES), in_map)
    out_spec = pl.BlockSpec((1, acc_rows, LANES), lambda c, i: (c, 0, 0))

    # 6 double-buffered input tiles + accumulator + output tile, plus margin.
    vmem_need = (6 * 2 * block_rows * LANES * itemsize
                 + acc_rows * LANES * 4
                 + 2 * acc_rows * LANES * 4)
    vmem_limit = int(vmem_need + (8 << 20))

    cost = pl.CostEstimate(
        flops=11 * n_aligned,
        transcendentals=0,
        bytes_accessed=6 * n_aligned * itemsize
                       + num_shards * acc_rows * LANES * 4,
    )

    kernel = functools.partial(
        _loss_kernel,
        block_rows=block_rows,
        blocks_per_shard=blocks_per_shard,
        num_blocks=num_blocks,
        rows=rows,
        reduce_to_acc=reduce_to_acc,
        has_tail=has_tail,
        needs_range_check=needs_range_check,
    )

    partials = pl.pallas_call(
        kernel,
        out_shape=jax.ShapeDtypeStruct((num_shards, acc_rows, LANES),
                                       jnp.float32),
        grid_spec=pltpu.PrefetchScalarGridSpec(
            num_scalar_prefetch=0,
            grid=(num_shards, blocks_per_shard),
            in_specs=[in_spec] * 6,
            out_specs=out_spec,
            scratch_shapes=[pltpu.VMEM((acc_rows, LANES), jnp.float32)],
        ),
        compiler_params=pltpu.CompilerParams(
            dimension_semantics=("parallel", "arbitrary"),
            vmem_limit_bytes=vmem_limit,
        ),
        cost_estimate=cost,
    )(*args)

    # Tiny final reduction of the (shards, 8, 128) per-core partials.
    return (jnp.sum(partials) + tail_sum) / jnp.float32(n_elem)


def _reference(a_curr, a_prev, a_next, t_curr, t_prev, t_next):
    mse = lambda x, y: jnp.mean((x - y) ** 2)
    return (mse(a_curr - a_next, t_curr - t_next)
            + mse(a_curr - a_prev, t_curr - t_prev)
            + mse(a_curr, t_curr))


if __name__ == "__main__":
    key = jax.random.PRNGKey(0)
    B, C, H, W = 2, 4, 16, 16  # NCHW frames
    keys = jax.random.split(key, 6)
    shape = (B, C, H, W)
    a_curr = jax.random.normal(keys[0], shape, jnp.float32)
    a_prev = jax.random.normal(keys[1], shape, jnp.float32)
    a_next = jax.random.normal(keys[2], shape, jnp.float32)
    t_curr = jax.random.normal(keys[3], shape, jnp.float32)
    t_prev = jax.random.normal(keys[4], shape, jnp.float32)
    t_next = jax.random.normal(keys[5], shape, jnp.float32)

    loss = adjacent_frame_loss_mse(a_curr, a_prev, a_next,
                                   t_curr, t_prev, t_next)
    loss = jax.block_until_ready(loss)

    ref = _reference(a_curr, a_prev, a_next, t_curr, t_prev, t_next)
    assert jnp.allclose(loss, ref, rtol=1e-5, atol=1e-5), (loss, ref)
    print("KERNEL_OK")
</pallas_src>

<mosaic_0001>
module attributes {stable_mosaic.version = 11 : i64} {
  func.func @_loss_kernel(%arg0: i32, %arg1: i32, %arg2: memref<16x128xf32, #tpu.memory_space<vmem>>, %arg3: memref<16x128xf32, #tpu.memory_space<vmem>>, %arg4: memref<16x128xf32, #tpu.memory_space<vmem>>, %arg5: memref<16x128xf32, #tpu.memory_space<vmem>>, %arg6: memref<16x128xf32, #tpu.memory_space<vmem>>, %arg7: memref<16x128xf32, #tpu.memory_space<vmem>>, %arg8: memref<1x8x128xf32, #tpu.memory_space<vmem>>, %arg9: memref<8x128xf32, #tpu.memory_space<vmem>>) attributes {dimension_semantics = [#tpu.dimension_semantics<parallel>, #tpu.dimension_semantics<arbitrary>], iteration_bounds = array<i64: 1, 1>, scalar_prefetch = 0 : i64, scratch_operands = 1 : i64, tpu.core_type = #tpu.core_type<tc>, window_params = [{transform_indices = @transform_0, window_bounds = array<i64: 16, 128>}, {transform_indices = @transform_1, window_bounds = array<i64: 16, 128>}, {transform_indices = @transform_2, window_bounds = array<i64: 16, 128>}, {transform_indices = @transform_3, window_bounds = array<i64: 16, 128>}, {transform_indices = @transform_4, window_bounds = array<i64: 16, 128>}, {transform_indices = @transform_5, window_bounds = array<i64: 16, 128>}, {transform_indices = @transform_6, window_bounds = array<i64: 1, 8, 128>}]} {
    %c0_i32 = arith.constant 0 : i32
    %0 = arith.cmpi eq, %arg1, %c0_i32 : i32
    %1 = arith.extui %0 : i1 to i32
    %c0_i32_0 = arith.constant 0 : i32
    %2 = arith.cmpi ne, %1, %c0_i32_0 : i32
    scf.if %2 {
      %cst_18 = arith.constant 0.000000e+00 : f32
      %27 = vector.broadcast %cst_18 : f32 to vector<8x128xf32>
      %c0_19 = arith.constant 0 : index
      %c0_20 = arith.constant 0 : index
      %28 = vector.load %arg9[%c0_19, %c0_20] : memref<8x128xf32, #tpu.memory_space<vmem>>, vector<8x128xf32>
      tpu.vector_store %arg9[%c0_19, %c0_20], %27 {strides = array<i32>} : memref<8x128xf32, #tpu.memory_space<vmem>>, vector<8x128xf32>,
    } else {
    }
    %c0 = arith.constant 0 : index
    %c0_1 = arith.constant 0 : index
    %3 = vector.load %arg2[%c0, %c0_1] : memref<16x128xf32, #tpu.memory_space<vmem>>, vector<16x128xf32>
    %c0_2 = arith.constant 0 : index
    %c0_3 = arith.constant 0 : index
    %4 = vector.load %arg3[%c0_2, %c0_3] : memref<16x128xf32, #tpu.memory_space<vmem>>, vector<16x128xf32>
    %c0_4 = arith.constant 0 : index
    %c0_5 = arith.constant 0 : index
    %5 = vector.load %arg4[%c0_4, %c0_5] : memref<16x128xf32, #tpu.memory_space<vmem>>, vector<16x128xf32>
    %c0_6 = arith.constant 0 : index
    %c0_7 = arith.constant 0 : index
    %6 = vector.load %arg5[%c0_6, %c0_7] : memref<16x128xf32, #tpu.memory_space<vmem>>, vector<16x128xf32>
    %c0_8 = arith.constant 0 : index
    %c0_9 = arith.constant 0 : index
    %7 = vector.load %arg6[%c0_8, %c0_9] : memref<16x128xf32, #tpu.memory_space<vmem>>, vector<16x128xf32>
    %c0_10 = arith.constant 0 : index
    %c0_11 = arith.constant 0 : index
    %8 = vector.load %arg7[%c0_10, %c0_11] : memref<16x128xf32, #tpu.memory_space<vmem>>, vector<16x128xf32>
    %9 = arith.subf %3, %6 : vector<16x128xf32>
    %10 = arith.subf %5, %8 : vector<16x128xf32>
    %11 = arith.subf %4, %7 : vector<16x128xf32>
    %12 = arith.subf %9, %10 : vector<16x128xf32>
    %13 = arith.subf %9, %11 : vector<16x128xf32>
    %14 = arith.mulf %12, %12 : vector<16x128xf32>
    %15 = arith.mulf %13, %13 : vector<16x128xf32>
    %16 = arith.addf %14, %15 : vector<16x128xf32>
    %17 = arith.mulf %9, %9 : vector<16x128xf32>
    %18 = arith.addf %16, %17 : vector<16x128xf32>
    %c0_12 = arith.constant 0 : index
    %c0_13 = arith.constant 0 : index
    %19 = vector.load %arg9[%c0_12, %c0_13] : memref<8x128xf32, #tpu.memory_space<vmem>>, vector<8x128xf32>
    %20 = vector.shape_cast %18 : vector<16x128xf32> to vector<2x8x128xf32>
    %cst = arith.constant dense<0.000000e+00> : vector<8x128xf32>
    %21 = vector.multi_reduction <add>, %20, %cst [0] : vector<2x8x128xf32> to vector<8x128xf32>
    %22 = arith.addf %19, %21 : vector<8x128xf32>
    %c0_14 = arith.constant 0 : index
    %c0_15 = arith.constant 0 : index
    %23 = vector.load %arg9[%c0_14, %c0_15] : memref<8x128xf32, #tpu.memory_space<vmem>>, vector<8x128xf32>
    tpu.vector_store %arg9[%c0_14, %c0_15], %22 {strides = array<i32>} : memref<8x128xf32, #tpu.memory_space<vmem>>, vector<8x128xf32>,
    %c0_i32_16 = arith.constant 0 : i32
    %24 = arith.cmpi eq, %arg1, %c0_i32_16 : i32
    %25 = arith.extui %24 : i1 to i32
    %c0_i32_17 = arith.constant 0 : i32
    %26 = arith.cmpi ne, %25, %c0_i32_17 : i32
    scf.if %26 {
      %c0_18 = arith.constant 0 : index
      %c0_19 = arith.constant 0 : index
      %27 = vector.load %arg9[%c0_18, %c0_19] : memref<8x128xf32, #tpu.memory_space<vmem>>, vector<8x128xf32>
      %c0_20 = arith.constant 0 : index
      %c0_21 = arith.constant 0 : index
      %c0_22 = arith.constant 0 : index
      %28 = vector.load %arg8[%c0_20, %c0_21, %c0_22] : memref<1x8x128xf32, #tpu.memory_space<vmem>>, vector<1x8x128xf32>
      %29 = vector.shape_cast %28 : vector<1x8x128xf32> to vector<8x128xf32>
      %30 = vector.shape_cast %27 : vector<8x128xf32> to vector<1x8x128xf32>
      tpu.vector_store %arg8[%c0_20, %c0_21, %c0_22], %30 {strides = array<i32>} : memref<1x8x128xf32, #tpu.memory_space<vmem>>, vector<1x8x128xf32>,
    } else {
    }
    return
  }
  func.func @transform_0(%arg0: i32, %arg1: i32) -> (i32, i32) {
    %c1_i32 = arith.constant 1 : i32
    %0 = arith.muli %arg0, %c1_i32 : i32
    %1 = arith.addi %0, %arg1 : i32
    %c0_i32 = arith.constant 0 : i32
    %c0_i32_0 = arith.constant 0 : i32
    return %1, %c0_i32 : i32, i32
  }
  func.func @transform_1(%arg0: i32, %arg1: i32) -> (i32, i32) {
    %c1_i32 = arith.constant 1 : i32
    %0 = arith.muli %arg0, %c1_i32 : i32
    %1 = arith.addi %0, %arg1 : i32
    %c0_i32 = arith.constant 0 : i32
    %c0_i32_0 = arith.constant 0 : i32
    return %1, %c0_i32 : i32, i32
  }
  func.func @transform_2(%arg0: i32, %arg1: i32) -> (i32, i32) {
    %c1_i32 = arith.constant 1 : i32
    %0 = arith.muli %arg0, %c1_i32 : i32
    %1 = arith.addi %0, %arg1 : i32
    %c0_i32 = arith.constant 0 : i32
    %c0_i32_0 = arith.constant 0 : i32
    return %1, %c0_i32 : i32, i32
  }
  func.func @transform_3(%arg0: i32, %arg1: i32) -> (i32, i32) {
    %c1_i32 = arith.constant 1 : i32
    %0 = arith.muli %arg0, %c1_i32 : i32
    %1 = arith.addi %0, %arg1 : i32
    %c0_i32 = arith.constant 0 : i32
    %c0_i32_0 = arith.constant 0 : i32
    return %1, %c0_i32 : i32, i32
  }
  func.func @transform_4(%arg0: i32, %arg1: i32) -> (i32, i32) {
    %c1_i32 = arith.constant 1 : i32
    %0 = arith.muli %arg0, %c1_i32 : i32
    %1 = arith.addi %0, %arg1 : i32
    %c0_i32 = arith.constant 0 : i32
    %c0_i32_0 = arith.constant 0 : i32
    return %1, %c0_i32 : i32, i32
  }
  func.func @transform_5(%arg0: i32, %arg1: i32) -> (i32, i32) {
    %c1_i32 = arith.constant 1 : i32
    %0 = arith.muli %arg0, %c1_i32 : i32
    %1 = arith.addi %0, %arg1 : i32
    %c0_i32 = arith.constant 0 : i32
    %c0_i32_0 = arith.constant 0 : i32
    return %1, %c0_i32 : i32, i32
  }
  func.func @transform_6(%arg0: i32, %arg1: i32) -> (i32, i32, i32) {
    %c0_i32 = arith.constant 0 : i32
    %c0_i32_0 = arith.constant 0 : i32
    %c0_i32_1 = arith.constant 0 : i32
    return %arg0, %c0_i32, %c0_i32_0 : i32, i32, i32
  }
}

</mosaic_0001>

<llo_original>
// kernel: tpu_custom_call.1
$region0: #{tpu_custom_call.1}
  #allocation0 [shape = 'u32[]', space=smem, size = 0x4, offset = 0x4, fixed_abs, tag = 'smem constant byte address 0x4 - core index']
  #allocation1 [shape = 'u32[144,128]{1,0:T(1,128)}', space=vmem, size = 0x12000, scoped, tag = 'internal scratch']
  #allocation2 [shape = 'f32[8,128]{1,0:T(8,128)}', space=vmem, size = 0x1000, scoped, tag = 'scratch operand']
  %s0 = inlined_call_operand.hbm [shape: f32[16,128], index: 0, kind: input, shape index: {}]
  %s1 = inlined_call_operand.hbm [shape: f32[16,128], index: 1, kind: input, shape index: {}]
  %s2 = inlined_call_operand.hbm [shape: f32[16,128], index: 2, kind: input, shape index: {}]
  %s3 = inlined_call_operand.hbm [shape: f32[16,128], index: 3, kind: input, shape index: {}]
  %s4 = inlined_call_operand.hbm [shape: f32[16,128], index: 4, kind: input, shape index: {}]
  %s5 = inlined_call_operand.hbm [shape: f32[16,128], index: 5, kind: input, shape index: {}]
  %s6 = inlined_call_operand.hbm [shape: f32[1,8,128], index: 6, kind: output, shape index: {}]
  %s7 = sld [smem:[#allocation0]]
  $region66: #{tpu_custom_call.1} parent=0
    _
  %s9 = ssub.s32 1, %s7
  %s10 = scalar_select 0, %s9, %s7
  $region1: #{tpu_custom_call.1} parent=0
    #allocation3 [shape = 'u8[8192]{0}', space=vmem, size = 0x2000, scoped, tag = 'input window, operand 0, single buffered']
    #allocation4 [shape = 's32[1]{0}', space=sflag, size = 0x4, scoped, tag = 'scoped memory for tpu_custom_call.1']
    #allocation5 [shape = 's32[1]{0}', space=sflag, size = 0x4, scoped, tag = 'scoped memory for tpu_custom_call.1']
    #allocation6 [shape = 'u8[8192]{0}', space=vmem, size = 0x2000, scoped, tag = 'input window, operand 1, single buffered']
    #allocation7 [shape = 's32[1]{0}', space=sflag, size = 0x4, scoped, tag = 'scoped memory for tpu_custom_call.1']
    #allocation8 [shape = 'u8[8192]{0}', space=vmem, size = 0x2000, scoped, tag = 'input window, operand 2, single buffered']
    #allocation9 [shape = 'u8[8192]{0}', space=vmem, size = 0x2000, scoped, tag = 'input window, operand 3, single buffered']
    #allocation10 [shape = 's32[1]{0}', space=sflag, size = 0x4, scoped, tag = 'scoped memory for tpu_custom_call.1']
    #allocation11 [shape = 'u8[8192]{0}', space=vmem, size = 0x2000, scoped, tag = 'input window, operand 4, single buffered']
    #allocation12 [shape = 'u8[8192]{0}', space=vmem, size = 0x2000, scoped, tag = 'input window, operand 5, single buffered']
    #allocation13 [shape = 's32[1]{0}', space=sflag, size = 0x4, scoped, tag = 'scoped memory for tpu_custom_call.1']
    #allocation14 [shape = 'u8[4096]{0}', space=vmem, size = 0x1000, scoped, tag = 'output window, operand 0, single buffered']
    %11 = vsyncpa [#allocation4], 0
    %12 = vsyncpa [#allocation7], 0
    %13 = vsyncpa [#allocation10], 0
    %14 = vsyncpa [#allocation13], 0
    %15 = vsyncpa [#allocation5], 0
    // Predicated region
    $region2: #{tpu_custom_call.1} parent=1 // pred_check
      _
    $region3: #{tpu_custom_call.1} parent=1 // pred_check_branch
      %17 = sbr.rel (0) target = $region5
    $region4: #{tpu_custom_call.1} parent=1 // pred_region
      %s18 = sadd.s32 0, 0
      %s19 = smul.u32 2, %s18
      %s21 = ssub.s32 256, 256
      %22 = vsyncadd [#allocation4], %s21
      %s23 = smul.addr %s19, 128
      %s24 = scalar_lea.hbm %s0, %s23
      %s25 = sshll.u32 [#allocation3], 4
      %s26 = int_to_ptr.vmem [resolvable:$true] %s25
      %31 = dma.hbm_to_vmem [thread:$0]  %s24, 256, %s26, [#allocation4], 128, 128, 8
    $region5: #{tpu_custom_call.1} parent=1 // pred_fallthru
      _
    // Predicated region
    $region6: #{tpu_custom_call.1} parent=1 // pred_check
      _
    $region7: #{tpu_custom_call.1} parent=1 // pred_check_branch
      %33 = sbr.rel (0) target = $region9
    $region8: #{tpu_custom_call.1} parent=1 // pred_region
      %s34 = sadd.s32 0, 0
      %s35 = smul.u32 2, %s34
      %s37 = ssub.s32 256, 256
      %38 = vsyncadd [#allocation7], %s37
      %s39 = smul.addr %s35, 128
      %s40 = scalar_lea.hbm %s1, %s39
      %s41 = sshll.u32 [#allocation6], 4
      %s42 = int_to_ptr.vmem [resolvable:$true] %s41
      %47 = dma.hbm_to_vmem [thread:$0]  %s40, 256, %s42, [#allocation7], 128, 128, 8
    $region9: #{tpu_custom_call.1} parent=1 // pred_fallthru
      _
    // Predicated region
    $region10: #{tpu_custom_call.1} parent=1 // pred_check
      _
    $region11: #{tpu_custom_call.1} parent=1 // pred_check_branch
      %49 = sbr.rel (0) target = $region13
    $region12: #{tpu_custom_call.1} parent=1 // pred_region
      %s50 = sadd.s32 0, 0
      %s51 = smul.u32 2, %s50
      %s53 = ssub.s32 256, 256
      %54 = vsyncadd [#allocation7], %s53
      %s55 = smul.addr %s51, 128
      %s56 = scalar_lea.hbm %s2, %s55
      %s57 = sshll.u32 [#allocation8], 4
      %s58 = int_to_ptr.vmem [resolvable:$true] %s57
      %63 = dma.hbm_to_vmem [thread:$0]  %s56, 256, %s58, [#allocation7], 128, 128, 8
    $region13: #{tpu_custom_call.1} parent=1 // pred_fallthru
      _
    // Predicated region
    $region14: #{tpu_custom_call.1} parent=1 // pred_check
      _
    $region15: #{tpu_custom_call.1} parent=1 // pred_check_branch
      %65 = sbr.rel (0) target = $region17
    $region16: #{tpu_custom_call.1} parent=1 // pred_region
      %s66 = sadd.s32 0, 0
      %s67 = smul.u32 2, %s66
      %s69 = ssub.s32 256, 256
      %70 = vsyncadd [#allocation10], %s69
      %s71 = smul.addr %s67, 128
      %s72 = scalar_lea.hbm %s3, %s71
      %s73 = sshll.u32 [#allocation9], 4
      %s74 = int_to_ptr.vmem [resolvable:$true] %s73
      %79 = dma.hbm_to_vmem [thread:$0]  %s72, 256, %s74, [#allocation10], 128, 128, 8
    $region17: #{tpu_custom_call.1} parent=1 // pred_fallthru
      _
    // Predicated region
    $region18: #{tpu_custom_call.1} parent=1 // pred_check
      _
    $region19: #{tpu_custom_call.1} parent=1 // pred_check_branch
      %81 = sbr.rel (0) target = $region21
    $region20: #{tpu_custom_call.1} parent=1 // pred_region
      %s82 = sadd.s32 0, 0
      %s83 = smul.u32 2, %s82
      %s85 = ssub.s32 256, 256
      %86 = vsyncadd [#allocation10], %s85
      %s87 = smul.addr %s83, 128
      %s88 = scalar_lea.hbm %s4, %s87
      %s89 = sshll.u32 [#allocation11], 4
      %s90 = int_to_ptr.vmem [resolvable:$true] %s89
      %95 = dma.hbm_to_vmem [thread:$0]  %s88, 256, %s90, [#allocation10], 128, 128, 8
    $region21: #{tpu_custom_call.1} parent=1 // pred_fallthru
      _
    // Predicated region
    $region22: #{tpu_custom_call.1} parent=1 // pred_check
      _
    $region23: #{tpu_custom_call.1} parent=1 // pred_check_branch
      %97 = sbr.rel (0) target = $region25
    $region24: #{tpu_custom_call.1} parent=1 // pred_region
      %s98 = sadd.s32 0, 0
      %s99 = smul.u32 2, %s98
      %s101 = ssub.s32 256, 256
      %102 = vsyncadd [#allocation13], %s101
      %s103 = smul.addr %s99, 128
      %s104 = scalar_lea.hbm %s5, %s103
      %s105 = sshll.u32 [#allocation12], 4
      %s106 = int_to_ptr.vmem [resolvable:$true] %s105
      %111 = dma.hbm_to_vmem [thread:$0]  %s104, 256, %s106, [#allocation13], 128, 128, 8
    $region25: #{tpu_custom_call.1} parent=1 // pred_fallthru
      _
    // Predicated region
    $region26: #{tpu_custom_call.1} parent=1 // pred_check
      _
    $region27: #{tpu_custom_call.1} parent=1 // pred_check_branch
      %113 = sbr.rel (0) target = $region29
    $region28: #{tpu_custom_call.1} parent=1 // pred_region
      %114 = dma.done [#allocation4], 256
    $region29: #{tpu_custom_call.1} parent=1 // pred_fallthru
      _
    // Predicated region
    $region30: #{tpu_custom_call.1} parent=1 // pred_check
      _
    $region31: #{tpu_custom_call.1} parent=1 // pred_check_branch
      %116 = sbr.rel (0) target = $region33
    $region32: #{tpu_custom_call.1} parent=1 // pred_region
      %117 = dma.done [#allocation7], 256
    $region33: #{tpu_custom_call.1} parent=1 // pred_fallthru
      _
    // Predicated region
    $region34: #{tpu_custom_call.1} parent=1 // pred_check
      _
    $region35: #{tpu_custom_call.1} parent=1 // pred_check_branch
      %119 = sbr.rel (0) target = $region37
    $region36: #{tpu_custom_call.1} parent=1 // pred_region
      %120 = dma.done [#allocation7], 256
    $region37: #{tpu_custom_call.1} parent=1 // pred_fallthru
      _
    // Predicated region
    $region38: #{tpu_custom_call.1} parent=1 // pred_check
      _
    $region39: #{tpu_custom_call.1} parent=1 // pred_check_branch
      %122 = sbr.rel (0) target = $region41
    $region40: #{tpu_custom_call.1} parent=1 // pred_region
      %123 = dma.done [#allocation10], 256
    $region41: #{tpu_custom_call.1} parent=1 // pred_fallthru
      _
    // Predicated region
    $region42: #{tpu_custom_call.1} parent=1 // pred_check
      _
    $region43: #{tpu_custom_call.1} parent=1 // pred_check_branch
      %125 = sbr.rel (0) target = $region45
    $region44: #{tpu_custom_call.1} parent=1 // pred_region
      %126 = dma.done [#allocation10], 256
    $region45: #{tpu_custom_call.1} parent=1 // pred_fallthru
      _
    // Predicated region
    $region46: #{tpu_custom_call.1} parent=1 // pred_check
      _
    $region47: #{tpu_custom_call.1} parent=1 // pred_check_branch
      %128 = sbr.rel (0) target = $region49
    $region48: #{tpu_custom_call.1} parent=1 // pred_region
      %129 = dma.done [#allocation13], 256
    $region49: #{tpu_custom_call.1} parent=1 // pred_fallthru
      _
    %s130 = sadd.s32 0, 0
    %s131 = smul.u32 2, %s130
    %s132 = sadd.s32 0, 0
    %s133 = smul.u32 2, %s132
    %s134 = sadd.s32 0, 0
    %s135 = smul.u32 2, %s134
    %s136 = sadd.s32 0, 0
    %s137 = smul.u32 2, %s136
    %s138 = sadd.s32 0, 0
    %s139 = smul.u32 2, %s138
    %s140 = sadd.s32 0, 0
    %s141 = smul.u32 2, %s140
    %p142 = scmp.eq.s32.totalorder 0, 0
    // Predicated region
    $region50: #{tpu_custom_call.1} parent=1 // pred_check
      %p143 = pneg %p142
    $region51: #{tpu_custom_call.1} parent=1 // pred_check_branch
      %145 = sbr.rel (%p143) target = $region53
    $region52: #{tpu_custom_call.1} parent=1 // pred_region
      %146 = vst [vmem:[#allocation2] sm:$0xff] 0.0
    $region53: #{tpu_custom_call.1} parent=1 // pred_fallthru
      _
    %v147 = vld [vmem:[#allocation3] sm:$0xff]
    %v148 = vld [vmem:[#allocation3 + $0x8] sm:$0xff]
    %v149 = vld [vmem:[#allocation6] sm:$0xff]
    %v150 = vld [vmem:[#allocation6 + $0x8] sm:$0xff]
    %v151 = vld [vmem:[#allocation8] sm:$0xff]
    %v152 = vld [vmem:[#allocation8 + $0x8] sm:$0xff]
    %v153 = vld [vmem:[#allocation9] sm:$0xff]
    %v154 = vld [vmem:[#allocation9 + $0x8] sm:$0xff]
    %v155 = vld [vmem:[#allocation11] sm:$0xff]
    %v156 = vld [vmem:[#allocation11 + $0x8] sm:$0xff]
    %v157 = vld [vmem:[#allocation12] sm:$0xff]
    %v158 = vld [vmem:[#allocation12 + $0x8] sm:$0xff]
    %v159 = vsub.f32 %v147, %v153
    %v160 = vsub.f32 %v148, %v154
    %v161 = vsub.f32 %v151, %v157
    %v162 = vsub.f32 %v152, %v158
    %v163 = vsub.f32 %v149, %v155
    %v164 = vsub.f32 %v150, %v156
    %v165 = vsub.f32 %v159, %v161
    %v166 = vsub.f32 %v160, %v162
    %v167 = vsub.f32 %v159, %v163
    %v168 = vsub.f32 %v160, %v164
    %v169 = vmul.f32 %v165, %v165
    %v170 = vmul.f32 %v166, %v166
    %v171 = vmul.f32 %v167, %v167
    %v172 = vmul.f32 %v168, %v168
    %v173 = vadd.f32 %v169, %v171
    %v174 = vadd.f32 %v170, %v172
    %v175 = vmul.f32 %v159, %v159
    %v176 = vmul.f32 %v160, %v160
    %v177 = vadd.f32 %v173, %v175
    %v178 = vadd.f32 %v174, %v176
    %v179 = vld [vmem:[#allocation2] sm:$0xff]
    %v180 = vadd.f32 %v177, %v178
    %v181 = vadd.f32 %v179, %v180
    %182 = vst [vmem:[#allocation2] sm:$0xff] %v181
    // Predicated region
    $region54: #{tpu_custom_call.1} parent=1 // pred_check
      %p183 = pneg %p142
    $region55: #{tpu_custom_call.1} parent=1 // pred_check_branch
      %185 = sbr.rel (%p183) target = $region57
    $region56: #{tpu_custom_call.1} parent=1 // pred_region
      %v186 = vld [vmem:[#allocation2] sm:$0xff]
      %187 = vst [vmem:[#allocation14] sm:$0xff] %v186
    $region57: #{tpu_custom_call.1} parent=1 // pred_fallthru
      _
    // Predicated region
    $region58: #{tpu_custom_call.1} parent=1 // pred_check
      _
    $region59: #{tpu_custom_call.1} parent=1 // pred_check_branch
      %189 = sbr.rel (0) target = $region61
    $region60: #{tpu_custom_call.1} parent=1 // pred_region
      %s191 = ssub.s32 128, 128
      %192 = vsyncadd [#allocation5], %s191
      %s194 = sshll.u32 [#allocation14], 4
      %s195 = int_to_ptr.vmem [resolvable:$true] %s194
      %197 = dma.vmem_to_hbm [thread:$0]  %s195, 128, %s6, [#allocation5]
    $region61: #{tpu_custom_call.1} parent=1 // pred_fallthru
      _
    // Predicated region
    $region62: #{tpu_custom_call.1} parent=1 // pred_check
      _
    $region63: #{tpu_custom_call.1} parent=1 // pred_check_branch
      %199 = sbr.rel (0) target = $region65
    $region64: #{tpu_custom_call.1} parent=1 // pred_region
      %200 = dma.done [#allocation5], 128
    $region65: #{tpu_custom_call.1} parent=1 // pred_fallthru
      _
    %201 = vsyncpa [#allocation4], 1
    %202 = vsyncpa [#allocation7], 1
    %203 = vsyncpa [#allocation10], 1
    %204 = vsyncpa [#allocation13], 1
    %205 = vsyncpa [#allocation5], 1

</llo_original>
